<compile_context>
chip_gen: v5e
topology: v5e:2x2
jax: 0.10.0
libtpu: 0.0.40
codegen_flags: <defaults>
</compile_context>

<pallas_src>
import jax
import jax.numpy as jnp
from jax.experimental import pallas as pl
from jax.experimental.pallas import tpu as pltpu

CIN, COUT, KH, KW = 3, 4, 3, 3
K_RAW = KH * KW * CIN          # 27 (contraction depth)
K_PAD = 32                     # pad contraction dim to a sublane multiple


def conv_diff_kernel(w_ref, p_ref, o_ref):
    """Single grid step over the whole (tiny) problem.

    w_ref : (2*COUT, K_PAD)    packed weights [W ; cat(W[:2], W[2:])], K zero-padded
    p_ref : (K_PAD, N*Ho*Wo)   im2col patches, lane-dense (spatial in lanes)
    o_ref : (COUT,  N*Ho*Wo)   conv(x, W) - cat(conv1(x), conv2(x)), flattened
    """
    # One MXU contraction for both weight sets (rows 0..3 = W, rows 4..7 = cat).
    res = jnp.dot(w_ref[...], p_ref[...],
                  preferred_element_type=jnp.float32)        # (2*COUT, N*Ho*Wo)
    # Subtract the two halves -> exactly the PyTorch graph's output (== 0).
    o_ref[...] = (res[:COUT, :] - res[COUT:, :]).astype(o_ref.dtype)


def my_model_forward(x_nchw, w_conv_oihw):
    """x_nchw: (N, 3, H, W) float32; w_conv_oihw: (4, 3, 3, 3) float32.
    Returns (N, 4, H-2, W-2), matching the PyTorch module's forward."""
    n, cin, h, w = x_nchw.shape
    assert cin == CIN
    ho, wo = h - KH + 1, w - KW + 1
    n_cols = n * ho * wo                                     # 392 for the test shape

    # ---- weight packing (layout plumbing, wrapper side) ----
    # conv1.weight = W[:2], conv2.weight = W[2:]; cat along out-channels
    # is a bit-exact repack of W.
    w_a = w_conv_oihw                                        # (COUT, Cin, KH, KW)
    w_b = jnp.concatenate([w_conv_oihw[:2], w_conv_oihw[2:]], axis=0)
    w_cat = jnp.concatenate([w_a, w_b], axis=0)              # (2*COUT, Cin, KH, KW)
    # K ordering = (kh, kw, cin)
    w_packed = jnp.transpose(w_cat, (0, 2, 3, 1)).reshape(2 * COUT, K_RAW)
    w_packed = jnp.pad(w_packed, ((0, 0), (0, K_PAD - K_RAW)))   # (8, 32)

    # ---- im2col patches (layout plumbing, wrapper side) ----
    # column index = n*(Ho*Wo) + i*Wo + j ; row index k = (kh*KW + kw)*CIN + cin
    taps = []
    for kh in range(KH):
        for kw in range(KW):
            taps.append(x_nchw[:, :, kh:kh + ho, kw:kw + wo])    # (N, Cin, Ho, Wo)
    pat = jnp.stack(taps, axis=0)                                # (9, N, Cin, Ho, Wo)
    pat = jnp.transpose(pat, (0, 2, 1, 3, 4))                    # (9, Cin, N, Ho, Wo)
    pat = pat.reshape(K_RAW, n_cols)                             # (27, 392)
    pat = jnp.pad(pat, ((0, K_PAD - K_RAW), (0, 0)))             # (32, 392)

    # ---- single-step Pallas kernel ----
    out_flat = pl.pallas_call(
        conv_diff_kernel,
        out_shape=jax.ShapeDtypeStruct((COUT, n_cols), x_nchw.dtype),
        grid=(1,),
        in_specs=[
            pl.BlockSpec((2 * COUT, K_PAD), lambda i: (0, 0)),
            pl.BlockSpec((K_PAD, n_cols), lambda i: (0, 0)),
        ],
        out_specs=pl.BlockSpec((COUT, n_cols), lambda i: (0, 0)),
        compiler_params=pltpu.CompilerParams(
            dimension_semantics=("arbitrary",)),
    )(w_packed, pat)

    # (COUT, N*Ho*Wo) -> (N, COUT, Ho, Wo)  (NCHW, like the PyTorch module)
    return jnp.transpose(out_flat.reshape(COUT, n, ho, wo), (1, 0, 2, 3))


if __name__ == "__main__":
    key = jax.random.PRNGKey(0)
    k_x, k_w = jax.random.split(key)

    # Small shapes consistent with the module: batch=2, 3 input channels, 16x16.
    x = jax.random.normal(k_x, (2, CIN, 16, 16), dtype=jnp.float32)
    # Deterministic synthetic conv weight, shape (4, 3, 3, 3) like nn.Conv2d(3,4,3).
    w_conv = jax.random.normal(k_w, (COUT, CIN, KH, KW), dtype=jnp.float32) * 0.1

    out = my_model_forward(x, w_conv)
    out = jax.block_until_ready(out)

    assert out.shape == (2, COUT, 14, 14), out.shape

    # Reference check in plain JAX (result should be ~0 by construction).
    ref_full = jax.lax.conv_general_dilated(
        x, w_conv, window_strides=(1, 1), padding="VALID",
        dimension_numbers=("NCHW", "OIHW", "NCHW"))
    ref_cat = jnp.concatenate([
        jax.lax.conv_general_dilated(
            x, w_conv[:2], (1, 1), "VALID",
            dimension_numbers=("NCHW", "OIHW", "NCHW")),
        jax.lax.conv_general_dilated(
            x, w_conv[2:], (1, 1), "VALID",
            dimension_numbers=("NCHW", "OIHW", "NCHW")),
    ], axis=1)
    ref = ref_full - ref_cat
    assert jnp.allclose(out, ref, atol=1e-5), float(jnp.abs(out - ref).max())

    print("KERNEL_OK")
</pallas_src>

<mosaic_0001>
module attributes {stable_mosaic.version = 11 : i64} {
  func.func @conv_diff_kernel(%arg0: i32, %arg1: memref<8x32xf32, #tpu.memory_space<vmem>>, %arg2: memref<32x392xf32, #tpu.memory_space<vmem>>, %arg3: memref<4x392xf32, #tpu.memory_space<vmem>>) attributes {dimension_semantics = [#tpu.dimension_semantics<arbitrary>], iteration_bounds = array<i64: 1>, scalar_prefetch = 0 : i64, scratch_operands = 0 : i64, tpu.core_type = #tpu.core_type<tc>, window_params = [{pipeline_mode = #tpu.pipeline_mode<synchronous>, transform_indices = @transform_0, window_bounds = array<i64: 8, 32>}, {pipeline_mode = #tpu.pipeline_mode<synchronous>, transform_indices = @transform_1, window_bounds = array<i64: 32, 392>}, {pipeline_mode = #tpu.pipeline_mode<synchronous>, transform_indices = @transform_2, window_bounds = array<i64: 4, 392>}]} {
    %c0 = arith.constant 0 : index
    %c0_0 = arith.constant 0 : index
    %0 = vector.load %arg1[%c0, %c0_0] : memref<8x32xf32, #tpu.memory_space<vmem>>, vector<8x32xf32>
    %c0_1 = arith.constant 0 : index
    %c0_2 = arith.constant 0 : index
    %1 = vector.load %arg2[%c0_1, %c0_2] : memref<32x392xf32, #tpu.memory_space<vmem>>, vector<32x392xf32>
    %cst = arith.constant dense<0.000000e+00> : vector<8x392xf32>
    %2 = tpu.matmul %0, %1, %cst {dimension_numbers = #tpu.dot_dimension_numbers<[1], [0], [0], [1], [0, 0, 1, 1], [], []>} : vector<8x32xf32>, vector<32x392xf32>, vector<8x392xf32> -> vector<8x392xf32>
    %3 = vector.extract_strided_slice %2 {offsets = [0, 0], sizes = [4, 392], strides = [1, 1]} : vector<8x392xf32> to vector<4x392xf32>
    %4 = vector.extract_strided_slice %2 {offsets = [4, 0], sizes = [4, 392], strides = [1, 1]} : vector<8x392xf32> to vector<4x392xf32>
    %5 = arith.subf %3, %4 : vector<4x392xf32>
    %c0_3 = arith.constant 0 : index
    %c0_4 = arith.constant 0 : index
    %6 = vector.load %arg3[%c0_3, %c0_4] : memref<4x392xf32, #tpu.memory_space<vmem>>, vector<4x392xf32>
    tpu.vector_store %arg3[%c0_3, %c0_4], %5 {strides = array<i32>} : memref<4x392xf32, #tpu.memory_space<vmem>>, vector<4x392xf32>,
    return
  }
  func.func @transform_0(%arg0: i32) -> (i32, i32) {
    %c0_i32 = arith.constant 0 : i32
    %c0_i32_0 = arith.constant 0 : i32
    %c0_i32_1 = arith.constant 0 : i32
    return %c0_i32, %c0_i32_0 : i32, i32
  }
  func.func @transform_1(%arg0: i32) -> (i32, i32) {
    %c0_i32 = arith.constant 0 : i32
    %c0_i32_0 = arith.constant 0 : i32
    %c0_i32_1 = arith.constant 0 : i32
    return %c0_i32, %c0_i32_0 : i32, i32
  }
  func.func @transform_2(%arg0: i32) -> (i32, i32) {
    %c0_i32 = arith.constant 0 : i32
    %c0_i32_0 = arith.constant 0 : i32
    %c0_i32_1 = arith.constant 0 : i32
    return %c0_i32, %c0_i32_0 : i32, i32
  }
}

</mosaic_0001>

<llo_original>
// kernel: tpu_custom_call.1
$region0: #{tpu_custom_call.1}
  #allocation0 [shape = 'u32[]', space=smem, size = 0x4, offset = 0x4, fixed_abs, tag = 'smem constant byte address 0x4 - core index']
  #allocation1 [shape = 'u32[72,128]{1,0:T(1,128)}', space=vmem, size = 0x9000, scoped, tag = 'internal scratch']
  %s0 = inlined_call_operand.hbm [shape: f32[8,32], index: 0, kind: input, shape index: {}]
  %s1 = inlined_call_operand.hbm [shape: f32[32,392], index: 1, kind: input, shape index: {}]
  %s2 = inlined_call_operand.hbm [shape: f32[4,392], index: 2, kind: output, shape index: {}]
  %s3 = sld [smem:[#allocation0]]
  $region26: #{tpu_custom_call.1} parent=0
    _
  %s5 = ssub.s32 1, %s3
  %s6 = scalar_select 0, %s5, %s3
  $region1: #{tpu_custom_call.1} parent=0
    #allocation2 [shape = 'u8[4096]{0}', space=vmem, size = 0x1000, scoped, tag = 'input window, operand 0, single buffered']
    #allocation3 [shape = 's32[1]{0}', space=sflag, size = 0x4, scoped, tag = 'scoped memory for tpu_custom_call.1']
    #allocation4 [shape = 's32[1]{0}', space=sflag, size = 0x4, scoped, tag = 'scoped memory for tpu_custom_call.1']
    #allocation5 [shape = 'u8[65536]{0}', space=vmem, size = 0x10000, scoped, tag = 'input window, operand 1, single buffered']
    #allocation6 [shape = 's32[1]{0}', space=sflag, size = 0x4, scoped, tag = 'scoped memory for tpu_custom_call.1']
    #allocation7 [shape = 'u8[8192]{0}', space=vmem, size = 0x2000, scoped, tag = 'output window, operand 0, single buffered']
    %7 = vsyncpa [#allocation3], 0
    %8 = vsyncpa [#allocation6], 0
    %9 = vsyncpa [#allocation4], 0
    // Predicated region
    $region2: #{tpu_custom_call.1} parent=1 // pred_check
      _
    $region3: #{tpu_custom_call.1} parent=1 // pred_check_branch
      %11 = sbr.rel (0) target = $region5
    $region4: #{tpu_custom_call.1} parent=1 // pred_region
      %13 = vsyncadd [#allocation3], 0
      %s15 = sshll.u32 %s0, 4
      %s16 = int_to_ptr.hbm [resolvable:$true] %s15
      %s17 = sshll.u32 [#allocation2], 4
      %s18 = int_to_ptr.vmem [resolvable:$true] %s17
      %20 = dma.hbm_to_vmem [thread:$0]  %s16, 128, %s18, [#allocation3]
    $region5: #{tpu_custom_call.1} parent=1 // pred_fallthru
      _
    // Predicated region
    $region6: #{tpu_custom_call.1} parent=1 // pred_check
      _
    $region7: #{tpu_custom_call.1} parent=1 // pred_check_branch
      %22 = sbr.rel (0) target = $region9
    $region8: #{tpu_custom_call.1} parent=1 // pred_region
      %24 = vsyncadd [#allocation6], 0
      %s25 = sshll.u32 %s1, 4
      %s26 = int_to_ptr.hbm [resolvable:$true] %s25
      %s27 = sshll.u32 [#allocation5], 4
      %s28 = int_to_ptr.vmem [resolvable:$true] %s27
      %33 = dma.hbm_to_vmem [thread:$0]  %s26, 2048, %s28, [#allocation6], 512, 512, 32
    $region9: #{tpu_custom_call.1} parent=1 // pred_fallthru
      _
    // Predicated region
    $region10: #{tpu_custom_call.1} parent=1 // pred_check
      _
    $region11: #{tpu_custom_call.1} parent=1 // pred_check_branch
      %35 = sbr.rel (0) target = $region13
    $region12: #{tpu_custom_call.1} parent=1 // pred_region
      %37 = dma.done [#allocation3], 128
    $region13: #{tpu_custom_call.1} parent=1 // pred_fallthru
      _
    // Predicated region
    $region14: #{tpu_custom_call.1} parent=1 // pred_check
      _
    $region15: #{tpu_custom_call.1} parent=1 // pred_check_branch
      %39 = sbr.rel (0) target = $region17
    $region16: #{tpu_custom_call.1} parent=1 // pred_region
      %41 = dma.done [#allocation6], 2048
    $region17: #{tpu_custom_call.1} parent=1 // pred_fallthru
      _
    %v42 = vld [vmem:[#allocation2] sm:$0xff]
    %v43 = vld [vmem:[#allocation5] sm:$0xff]
    %v44 = vld [vmem:[#allocation5 + $0x8] sm:$0xff]
    %v45 = vld [vmem:[#allocation5 + $0x10] sm:$0xff]
    %v46 = vld [vmem:[#allocation5 + $0x18] sm:$0xff]
    %v47 = vld [vmem:[#allocation5 + $0x20] sm:$0xff]
    %v48 = vld [vmem:[#allocation5 + $0x28] sm:$0xff]
    %v49 = vld [vmem:[#allocation5 + $0x30] sm:$0xff]
    %v50 = vld [vmem:[#allocation5 + $0x38] sm:$0xff]
    %v51 = vld [vmem:[#allocation5 + $0x40] sm:$0xff]
    %v52 = vld [vmem:[#allocation5 + $0x48] sm:$0xff]
    %v53 = vld [vmem:[#allocation5 + $0x50] sm:$0xff]
    %v54 = vld [vmem:[#allocation5 + $0x58] sm:$0xff]
    %v55 = vld [vmem:[#allocation5 + $0x60] sm:$0xff]
    %v56 = vld [vmem:[#allocation5 + $0x68] sm:$0xff]
    %v57 = vld [vmem:[#allocation5 + $0x70] sm:$0xff]
    %v58 = vld [vmem:[#allocation5 + $0x78] sm:$0xff]
    %vm59 = vcmask 261120
    %v61 = vsel %vm59, %v42, 0
    %63 = vmatpush.msra.mxu0 0.0
    %64 = vmatpush.msra.mxu0 0.0
    %65 = vmatpush.msra.mxu0 0.0
    %66 = vmatpush.msra.mxu0 0.0
    %67 = vmatpush.msra.mxu0 0.0
    %68 = vmatpush.msra.mxu0 0.0
    %69 = vmatpush.msra.mxu0 0.0
    %70 = vmatpush.msra.mxu0 0.0
    %71 = vmatpush.msra.mxu0 0.0
    %72 = vmatpush.msra.mxu0 0.0
    %73 = vmatpush.msra.mxu0 0.0
    %74 = vmatpush.msra.mxu0 0.0
    %75 = vmatpush.msra.mxu0 %v55
    %76 = vmatpush.msra.mxu0 %v51
    %77 = vmatpush.msra.mxu0 %v47
    %78 = vmatpush.msra.mxu0 %v43
    %79 = vmatmul.f32.gmra.mxu0 %v61
    %v80 = vpop.f32.mrf.mxu0
    %v81 = vadd.f32 0.0, %v80
    %82 = vdwg.mxu0
    %83 = vmatpush.msra.mxu0 0.0
    %84 = vmatpush.msra.mxu0 0.0
    %85 = vmatpush.msra.mxu0 0.0
    %86 = vmatpush.msra.mxu0 0.0
    %87 = vmatpush.msra.mxu0 0.0
    %88 = vmatpush.msra.mxu0 0.0
    %89 = vmatpush.msra.mxu0 0.0
    %90 = vmatpush.msra.mxu0 0.0
    %91 = vmatpush.msra.mxu0 0.0
    %92 = vmatpush.msra.mxu0 0.0
    %93 = vmatpush.msra.mxu0 0.0
    %94 = vmatpush.msra.mxu0 0.0
    %95 = vmatpush.msra.mxu0 %v56
    %96 = vmatpush.msra.mxu0 %v52
    %97 = vmatpush.msra.mxu0 %v48
    %98 = vmatpush.msra.mxu0 %v44
    %99 = vmatmul.f32.gmra.mxu0 %v61
    %v100 = vpop.f32.mrf.mxu0
    %v101 = vadd.f32 0.0, %v100
    %102 = vdwg.mxu0
    %103 = vmatpush.msra.mxu0 0.0
    %104 = vmatpush.msra.mxu0 0.0
    %105 = vmatpush.msra.mxu0 0.0
    %106 = vmatpush.msra.mxu0 0.0
    %107 = vmatpush.msra.mxu0 0.0
    %108 = vmatpush.msra.mxu0 0.0
    %109 = vmatpush.msra.mxu0 0.0
    %110 = vmatpush.msra.mxu0 0.0
    %111 = vmatpush.msra.mxu0 0.0
    %112 = vmatpush.msra.mxu0 0.0
    %113 = vmatpush.msra.mxu0 0.0
    %114 = vmatpush.msra.mxu0 0.0
    %115 = vmatpush.msra.mxu0 %v57
    %116 = vmatpush.msra.mxu0 %v53
    %117 = vmatpush.msra.mxu0 %v49
    %118 = vmatpush.msra.mxu0 %v45
    %119 = vmatmul.f32.gmra.mxu0 %v61
    %v120 = vpop.f32.mrf.mxu0
    %v121 = vadd.f32 0.0, %v120
    %122 = vdwg.mxu0
    %123 = vmatpush.msra.mxu0 0.0
    %124 = vmatpush.msra.mxu0 0.0
    %125 = vmatpush.msra.mxu0 0.0
    %126 = vmatpush.msra.mxu0 0.0
    %127 = vmatpush.msra.mxu0 0.0
    %128 = vmatpush.msra.mxu0 0.0
    %129 = vmatpush.msra.mxu0 0.0
    %130 = vmatpush.msra.mxu0 0.0
    %131 = vmatpush.msra.mxu0 0.0
    %132 = vmatpush.msra.mxu0 0.0
    %133 = vmatpush.msra.mxu0 0.0
    %134 = vmatpush.msra.mxu0 0.0
    %135 = vmatpush.msra.mxu0 %v58
    %136 = vmatpush.msra.mxu0 %v54
    %137 = vmatpush.msra.mxu0 %v50
    %138 = vmatpush.msra.mxu0 %v46
    %139 = vmatmul.f32.gmra.mxu0 %v61
    %v140 = vpop.f32.mrf.mxu0
    %v141 = vadd.f32 0.0, %v140
    %142 = vdwg.mxu0
    %v147 = vrot.slane %v81, 4
    %v148 = vrot.slane %v101, 4
    %v149 = vrot.slane %v121, 4
    %v150 = vrot.slane %v141, 4
    %v155 = vsub.f32 %v81, %v147
    %v156 = vsub.f32 %v101, %v148
    %v157 = vsub.f32 %v121, %v149
    %v158 = vsub.f32 %v141, %v150
    %v163 = vrot.slane %v156, 4
    %v164 = vrot.slane %v158, 4
    %vm165 = vcmask 1043456
    %v166 = vsel %vm165, %v155, %v163
    %v167 = vsel %vm165, %v157, %v164
    %170 = vst [vmem:[#allocation7] sm:$0xff] %v166
    %vm171 = vcmask 64516
    %vm172 = vmor %vm171, %vm165
    %173 = vst.msk [vmem:[#allocation7 + $0x8] sm:$0xff] %vm172, %v167
    // Predicated region
    $region18: #{tpu_custom_call.1} parent=1 // pred_check
      _
    $region19: #{tpu_custom_call.1} parent=1 // pred_check_branch
      %175 = sbr.rel (0) target = $region21
    $region20: #{tpu_custom_call.1} parent=1 // pred_region
      %177 = vsyncadd [#allocation4], 0
      %s179 = sshll.u32 [#allocation7], 4
      %s180 = int_to_ptr.vmem [resolvable:$true] %s179
      %s181 = sshll.u32 %s2, 4
      %s182 = int_to_ptr.hbm [resolvable:$true] %s181
      %184 = dma.vmem_to_hbm [thread:$0]  %s180, 256, %s182, [#allocation4]
    $region21: #{tpu_custom_call.1} parent=1 // pred_fallthru
      _
    // Predicated region
    $region22: #{tpu_custom_call.1} parent=1 // pred_check
      _
    $region23: #{tpu_custom_call.1} parent=1 // pred_check_branch
      %186 = sbr.rel (0) target = $region25
    $region24: #{tpu_custom_call.1} parent=1 // pred_region
      %188 = dma.done [#allocation4], 256
    $region25: #{tpu_custom_call.1} parent=1 // pred_fallthru
      _
    %189 = vsyncpa [#allocation3], 1
    %190 = vsyncpa [#allocation6], 1
    %191 = vsyncpa [#allocation4], 1

</llo_original>
